<compile_context>
chip_gen: v7x
topology: tpu7x:2x2x1
jax: 0.10.0
libtpu: 0.0.40
codegen_flags: <defaults>
</compile_context>

<pallas_src>
import jax
import jax.numpy as jnp
from jax.experimental import pallas as pl
from jax.experimental.pallas import tpu as pltpu


def cnn_liu_kernel(x_even_ref, x_odd_ref, w_ref, b_ref, o_ref):
    """Fused Conv1d(valid, stride 1) + MaxPool1d(2,2) + ReLU.

    x_even_ref: (B, Cin, ceil(L/2))   input at even length positions
    x_odd_ref : (B, Cin, floor(L/2))  input at odd length positions
    w_ref     : (Cout, Cin*K)         conv weight, (c, k) row-major flatten
    b_ref     : (Cout, 1)             conv bias
    o_ref     : (B, Cout, Lpool)      output, NCL layout (length on lanes)
    """
    B, Cin, _ = x_even_ref.shape
    Cout, CK = w_ref.shape
    K = CK // Cin
    Lpool = o_ref.shape[2]
    half = B * Lpool
    x_refs = (x_even_ref, x_odd_ref)

    # im2col with columns ordered (d, b, t): column d*B*Lpool + b*Lpool + t
    # holds the (Cin*K)-long input window starting at length position 2*t + d
    # of batch b.  Because the wrapper split the length axis into even/odd
    # streams, every piece is a CONTIGUOUS static slice (no strided loads, no
    # one-hot gather matmuls).  Loops are trace-time (shapes are tiny/static).
    rows = []
    for c in range(Cin):
        for k in range(K):
            pieces = []
            for d in (0, 1):                      # pooling partner (2t / 2t+1)
                r, a = (k + d) % 2, (k + d) // 2  # x[b,c,k+d+2t] == x_r[b,c,a+t]
                src = x_refs[r]
                for b in range(B):
                    pieces.append(src[b, c:c + 1, a:a + Lpool])   # (1, Lpool)
            rows.append(jnp.concatenate(pieces, axis=1))          # (1, 2*half)
    im2col = jnp.concatenate(rows, axis=0)                        # (Cin*K, 2*half)

    # Single MXU matmul: conv outputs for every batch / tap / pooling partner.
    conv = jnp.dot(w_ref[...], im2col,
                   preferred_element_type=jnp.float32)            # (Cout, 2*half)

    # MaxPool1d(kernel=2, stride=2): the two partners sit in the two lane
    # halves -> one VPU max over contiguous slices (no MXU, no strided ops).
    pooled = jnp.maximum(conv[:, :half], conv[:, half:2 * half])  # (Cout, half)
    out = jnp.maximum(pooled + b_ref[...], 0.0)                   # bias + ReLU

    for b in range(B):                                            # tiny static B
        o_ref[b] = out[:, b * Lpool:(b + 1) * Lpool].astype(o_ref.dtype)


def cnn_liu_forward(x_ncl, weight, bias):
    """x_ncl: (B, Cin, L) f32 (PyTorch NCL). weight: (Cout, Cin, K), bias: (Cout,).
    Returns (B, Cout, (L-K+1)//2), identical semantics to the PyTorch module."""
    B, Cin, L = x_ncl.shape
    Cout, _, K = weight.shape
    Lout = L - K + 1
    Lpool = Lout // 2

    # Layout plumbing only (replaces the old NCL<->NLC transposes): split the
    # length axis into even/odd streams so the kernel's stride-2 pooling turns
    # into a contiguous half/half max.
    x_even = x_ncl[:, :, 0::2]
    x_odd = x_ncl[:, :, 1::2]
    w2 = weight.reshape(Cout, Cin * K).astype(jnp.float32)   # (c,k) flatten
    b2 = bias.reshape(Cout, 1).astype(jnp.float32)

    # Problem is tiny -> whole arrays resident in VMEM, no grid (a grid would
    # just add ~0.35us/step on v5e/v6e).  At scale: tile B/L with BlockSpecs
    # (K-1 length halo), add a ('parallel',) batch grid axis to engage v7x's
    # two TensorCores, and cast operands to bf16 for the MXU on v6e/v7x.
    return pl.pallas_call(
        cnn_liu_kernel,
        out_shape=jax.ShapeDtypeStruct((B, Cout, Lpool), jnp.float32),
        in_specs=[pl.BlockSpec(memory_space=pltpu.MemorySpace.VMEM)] * 4,
        out_specs=pl.BlockSpec(memory_space=pltpu.MemorySpace.VMEM),
    )(x_even, x_odd, w2, b2)


def cnn_liu_reference(x_ncl, weight, bias):
    """Pure-JAX reference matching PyTorch Conv1d/MaxPool1d/ReLU semantics."""
    B, Cin, L = x_ncl.shape
    Cout, _, K = weight.shape
    Lout = L - K + 1
    conv = jnp.zeros((B, Cout, Lout), jnp.float32)
    for k in range(K):
        conv = conv + jnp.einsum("bcl,oc->bol", x_ncl[:, :, k:k + Lout],
                                 weight[:, :, k])
    conv = conv + bias[None, :, None]
    Lpool = Lout // 2
    pooled = jnp.maximum(conv[:, :, 0:2 * Lpool:2], conv[:, :, 1:2 * Lpool:2])
    return jnp.maximum(pooled, 0.0)


if __name__ == "__main__":
    # Module defaults: in_channel=2, hidden_channel=2, kernel_size=5.
    B, Cin, Cout, K, L = 2, 2, 2, 5, 16

    key = jax.random.PRNGKey(0)
    kx, kw, kb = jax.random.split(key, 3)
    x = jax.random.normal(kx, (B, Cin, L), dtype=jnp.float32)
    # PyTorch-style uniform init ±1/sqrt(Cin*K).
    bound = 1.0 / jnp.sqrt(jnp.float32(Cin * K))
    weight = jax.random.uniform(kw, (Cout, Cin, K), jnp.float32, -bound, bound)
    bias = jax.random.uniform(kb, (Cout,), jnp.float32, -bound, bound)

    out = jax.block_until_ready(cnn_liu_forward(x, weight, bias))
    ref = cnn_liu_reference(x, weight, bias)

    assert out.shape == (B, Cout, (L - K + 1) // 2), out.shape
    assert jnp.allclose(out, ref, atol=1e-5, rtol=1e-5), "mismatch vs reference"

    print("KERNEL_OK")
</pallas_src>

<mosaic_0001>
module attributes {stable_mosaic.version = 11 : i64} {
  func.func @cnn_liu_kernel(%arg0: memref<2x2x8xf32, #tpu.memory_space<vmem>>, %arg1: memref<2x2x8xf32, #tpu.memory_space<vmem>>, %arg2: memref<2x10xf32, #tpu.memory_space<vmem>>, %arg3: memref<2x1xf32, #tpu.memory_space<vmem>>, %arg4: memref<2x2x6xf32, #tpu.memory_space<vmem>>) attributes {dimension_semantics = [], scalar_prefetch = 0 : i64, scratch_operands = 0 : i64, tpu.core_type = #tpu.core_type<tc>} {
    %c0 = arith.constant 0 : index
    %c0_0 = arith.constant 0 : index
    %c0_1 = arith.constant 0 : index
    %0 = vector.load %arg0[%c0, %c0_0, %c0_1] : memref<2x2x8xf32, #tpu.memory_space<vmem>>, vector<1x1x6xf32>
    %1 = vector.shape_cast %0 : vector<1x1x6xf32> to vector<1x6xf32>
    %c1 = arith.constant 1 : index
    %c0_2 = arith.constant 0 : index
    %c0_3 = arith.constant 0 : index
    %2 = vector.load %arg0[%c1, %c0_2, %c0_3] : memref<2x2x8xf32, #tpu.memory_space<vmem>>, vector<1x1x6xf32>
    %3 = vector.shape_cast %2 : vector<1x1x6xf32> to vector<1x6xf32>
    %c0_4 = arith.constant 0 : index
    %c0_5 = arith.constant 0 : index
    %c0_6 = arith.constant 0 : index
    %4 = vector.load %arg1[%c0_4, %c0_5, %c0_6] : memref<2x2x8xf32, #tpu.memory_space<vmem>>, vector<1x1x6xf32>
    %5 = vector.shape_cast %4 : vector<1x1x6xf32> to vector<1x6xf32>
    %c1_7 = arith.constant 1 : index
    %c0_8 = arith.constant 0 : index
    %c0_9 = arith.constant 0 : index
    %6 = vector.load %arg1[%c1_7, %c0_8, %c0_9] : memref<2x2x8xf32, #tpu.memory_space<vmem>>, vector<1x1x6xf32>
    %7 = vector.shape_cast %6 : vector<1x1x6xf32> to vector<1x6xf32>
    %8 = tpu.concatenate %1, %3, %5, %7 in 1 : vector<1x6xf32>, vector<1x6xf32>, vector<1x6xf32>, vector<1x6xf32> -> vector<1x24xf32>
    %c0_10 = arith.constant 0 : index
    %c0_11 = arith.constant 0 : index
    %c0_12 = arith.constant 0 : index
    %9 = vector.load %arg1[%c0_10, %c0_11, %c0_12] : memref<2x2x8xf32, #tpu.memory_space<vmem>>, vector<1x1x6xf32>
    %10 = vector.shape_cast %9 : vector<1x1x6xf32> to vector<1x6xf32>
    %c1_13 = arith.constant 1 : index
    %c0_14 = arith.constant 0 : index
    %c0_15 = arith.constant 0 : index
    %11 = vector.load %arg1[%c1_13, %c0_14, %c0_15] : memref<2x2x8xf32, #tpu.memory_space<vmem>>, vector<1x1x6xf32>
    %12 = vector.shape_cast %11 : vector<1x1x6xf32> to vector<1x6xf32>
    %c0_16 = arith.constant 0 : index
    %c0_17 = arith.constant 0 : index
    %c1_18 = arith.constant 1 : index
    %13 = vector.load %arg0[%c0_16, %c0_17, %c1_18] : memref<2x2x8xf32, #tpu.memory_space<vmem>>, vector<1x1x6xf32>
    %14 = vector.shape_cast %13 : vector<1x1x6xf32> to vector<1x6xf32>
    %c1_19 = arith.constant 1 : index
    %c0_20 = arith.constant 0 : index
    %c1_21 = arith.constant 1 : index
    %15 = vector.load %arg0[%c1_19, %c0_20, %c1_21] : memref<2x2x8xf32, #tpu.memory_space<vmem>>, vector<1x1x6xf32>
    %16 = vector.shape_cast %15 : vector<1x1x6xf32> to vector<1x6xf32>
    %17 = tpu.concatenate %10, %12, %14, %16 in 1 : vector<1x6xf32>, vector<1x6xf32>, vector<1x6xf32>, vector<1x6xf32> -> vector<1x24xf32>
    %c0_22 = arith.constant 0 : index
    %c0_23 = arith.constant 0 : index
    %c1_24 = arith.constant 1 : index
    %18 = vector.load %arg0[%c0_22, %c0_23, %c1_24] : memref<2x2x8xf32, #tpu.memory_space<vmem>>, vector<1x1x6xf32>
    %19 = vector.shape_cast %18 : vector<1x1x6xf32> to vector<1x6xf32>
    %c1_25 = arith.constant 1 : index
    %c0_26 = arith.constant 0 : index
    %c1_27 = arith.constant 1 : index
    %20 = vector.load %arg0[%c1_25, %c0_26, %c1_27] : memref<2x2x8xf32, #tpu.memory_space<vmem>>, vector<1x1x6xf32>
    %21 = vector.shape_cast %20 : vector<1x1x6xf32> to vector<1x6xf32>
    %c0_28 = arith.constant 0 : index
    %c0_29 = arith.constant 0 : index
    %c1_30 = arith.constant 1 : index
    %22 = vector.load %arg1[%c0_28, %c0_29, %c1_30] : memref<2x2x8xf32, #tpu.memory_space<vmem>>, vector<1x1x6xf32>
    %23 = vector.shape_cast %22 : vector<1x1x6xf32> to vector<1x6xf32>
    %c1_31 = arith.constant 1 : index
    %c0_32 = arith.constant 0 : index
    %c1_33 = arith.constant 1 : index
    %24 = vector.load %arg1[%c1_31, %c0_32, %c1_33] : memref<2x2x8xf32, #tpu.memory_space<vmem>>, vector<1x1x6xf32>
    %25 = vector.shape_cast %24 : vector<1x1x6xf32> to vector<1x6xf32>
    %26 = tpu.concatenate %19, %21, %23, %25 in 1 : vector<1x6xf32>, vector<1x6xf32>, vector<1x6xf32>, vector<1x6xf32> -> vector<1x24xf32>
    %c0_34 = arith.constant 0 : index
    %c0_35 = arith.constant 0 : index
    %c1_36 = arith.constant 1 : index
    %27 = vector.load %arg1[%c0_34, %c0_35, %c1_36] : memref<2x2x8xf32, #tpu.memory_space<vmem>>, vector<1x1x6xf32>
    %28 = vector.shape_cast %27 : vector<1x1x6xf32> to vector<1x6xf32>
    %c1_37 = arith.constant 1 : index
    %c0_38 = arith.constant 0 : index
    %c1_39 = arith.constant 1 : index
    %29 = vector.load %arg1[%c1_37, %c0_38, %c1_39] : memref<2x2x8xf32, #tpu.memory_space<vmem>>, vector<1x1x6xf32>
    %30 = vector.shape_cast %29 : vector<1x1x6xf32> to vector<1x6xf32>
    %c0_40 = arith.constant 0 : index
    %c0_41 = arith.constant 0 : index
    %c2 = arith.constant 2 : index
    %31 = vector.load %arg0[%c0_40, %c0_41, %c2] : memref<2x2x8xf32, #tpu.memory_space<vmem>>, vector<1x1x6xf32>
    %32 = vector.shape_cast %31 : vector<1x1x6xf32> to vector<1x6xf32>
    %c1_42 = arith.constant 1 : index
    %c0_43 = arith.constant 0 : index
    %c2_44 = arith.constant 2 : index
    %33 = vector.load %arg0[%c1_42, %c0_43, %c2_44] : memref<2x2x8xf32, #tpu.memory_space<vmem>>, vector<1x1x6xf32>
    %34 = vector.shape_cast %33 : vector<1x1x6xf32> to vector<1x6xf32>
    %35 = tpu.concatenate %28, %30, %32, %34 in 1 : vector<1x6xf32>, vector<1x6xf32>, vector<1x6xf32>, vector<1x6xf32> -> vector<1x24xf32>
    %c0_45 = arith.constant 0 : index
    %c0_46 = arith.constant 0 : index
    %c2_47 = arith.constant 2 : index
    %36 = vector.load %arg0[%c0_45, %c0_46, %c2_47] : memref<2x2x8xf32, #tpu.memory_space<vmem>>, vector<1x1x6xf32>
    %37 = vector.shape_cast %36 : vector<1x1x6xf32> to vector<1x6xf32>
    %c1_48 = arith.constant 1 : index
    %c0_49 = arith.constant 0 : index
    %c2_50 = arith.constant 2 : index
    %38 = vector.load %arg0[%c1_48, %c0_49, %c2_50] : memref<2x2x8xf32, #tpu.memory_space<vmem>>, vector<1x1x6xf32>
    %39 = vector.shape_cast %38 : vector<1x1x6xf32> to vector<1x6xf32>
    %c0_51 = arith.constant 0 : index
    %c0_52 = arith.constant 0 : index
    %c2_53 = arith.constant 2 : index
    %40 = vector.load %arg1[%c0_51, %c0_52, %c2_53] : memref<2x2x8xf32, #tpu.memory_space<vmem>>, vector<1x1x6xf32>
    %41 = vector.shape_cast %40 : vector<1x1x6xf32> to vector<1x6xf32>
    %c1_54 = arith.constant 1 : index
    %c0_55 = arith.constant 0 : index
    %c2_56 = arith.constant 2 : index
    %42 = vector.load %arg1[%c1_54, %c0_55, %c2_56] : memref<2x2x8xf32, #tpu.memory_space<vmem>>, vector<1x1x6xf32>
    %43 = vector.shape_cast %42 : vector<1x1x6xf32> to vector<1x6xf32>
    %44 = tpu.concatenate %37, %39, %41, %43 in 1 : vector<1x6xf32>, vector<1x6xf32>, vector<1x6xf32>, vector<1x6xf32> -> vector<1x24xf32>
    %c0_57 = arith.constant 0 : index
    %c1_58 = arith.constant 1 : index
    %c0_59 = arith.constant 0 : index
    %45 = vector.load %arg0[%c0_57, %c1_58, %c0_59] : memref<2x2x8xf32, #tpu.memory_space<vmem>>, vector<1x1x6xf32>
    %46 = vector.shape_cast %45 : vector<1x1x6xf32> to vector<1x6xf32>
    %c1_60 = arith.constant 1 : index
    %c1_61 = arith.constant 1 : index
    %c0_62 = arith.constant 0 : index
    %47 = vector.load %arg0[%c1_60, %c1_61, %c0_62] : memref<2x2x8xf32, #tpu.memory_space<vmem>>, vector<1x1x6xf32>
    %48 = vector.shape_cast %47 : vector<1x1x6xf32> to vector<1x6xf32>
    %c0_63 = arith.constant 0 : index
    %c1_64 = arith.constant 1 : index
    %c0_65 = arith.constant 0 : index
    %49 = vector.load %arg1[%c0_63, %c1_64, %c0_65] : memref<2x2x8xf32, #tpu.memory_space<vmem>>, vector<1x1x6xf32>
    %50 = vector.shape_cast %49 : vector<1x1x6xf32> to vector<1x6xf32>
    %c1_66 = arith.constant 1 : index
    %c1_67 = arith.constant 1 : index
    %c0_68 = arith.constant 0 : index
    %51 = vector.load %arg1[%c1_66, %c1_67, %c0_68] : memref<2x2x8xf32, #tpu.memory_space<vmem>>, vector<1x1x6xf32>
    %52 = vector.shape_cast %51 : vector<1x1x6xf32> to vector<1x6xf32>
    %53 = tpu.concatenate %46, %48, %50, %52 in 1 : vector<1x6xf32>, vector<1x6xf32>, vector<1x6xf32>, vector<1x6xf32> -> vector<1x24xf32>
    %c0_69 = arith.constant 0 : index
    %c1_70 = arith.constant 1 : index
    %c0_71 = arith.constant 0 : index
    %54 = vector.load %arg1[%c0_69, %c1_70, %c0_71] : memref<2x2x8xf32, #tpu.memory_space<vmem>>, vector<1x1x6xf32>
    %55 = vector.shape_cast %54 : vector<1x1x6xf32> to vector<1x6xf32>
    %c1_72 = arith.constant 1 : index
    %c1_73 = arith.constant 1 : index
    %c0_74 = arith.constant 0 : index
    %56 = vector.load %arg1[%c1_72, %c1_73, %c0_74] : memref<2x2x8xf32, #tpu.memory_space<vmem>>, vector<1x1x6xf32>
    %57 = vector.shape_cast %56 : vector<1x1x6xf32> to vector<1x6xf32>
    %c0_75 = arith.constant 0 : index
    %c1_76 = arith.constant 1 : index
    %c1_77 = arith.constant 1 : index
    %58 = vector.load %arg0[%c0_75, %c1_76, %c1_77] : memref<2x2x8xf32, #tpu.memory_space<vmem>>, vector<1x1x6xf32>
    %59 = vector.shape_cast %58 : vector<1x1x6xf32> to vector<1x6xf32>
    %c1_78 = arith.constant 1 : index
    %c1_79 = arith.constant 1 : index
    %c1_80 = arith.constant 1 : index
    %60 = vector.load %arg0[%c1_78, %c1_79, %c1_80] : memref<2x2x8xf32, #tpu.memory_space<vmem>>, vector<1x1x6xf32>
    %61 = vector.shape_cast %60 : vector<1x1x6xf32> to vector<1x6xf32>
    %62 = tpu.concatenate %55, %57, %59, %61 in 1 : vector<1x6xf32>, vector<1x6xf32>, vector<1x6xf32>, vector<1x6xf32> -> vector<1x24xf32>
    %c0_81 = arith.constant 0 : index
    %c1_82 = arith.constant 1 : index
    %c1_83 = arith.constant 1 : index
    %63 = vector.load %arg0[%c0_81, %c1_82, %c1_83] : memref<2x2x8xf32, #tpu.memory_space<vmem>>, vector<1x1x6xf32>
    %64 = vector.shape_cast %63 : vector<1x1x6xf32> to vector<1x6xf32>
    %c1_84 = arith.constant 1 : index
    %c1_85 = arith.constant 1 : index
    %c1_86 = arith.constant 1 : index
    %65 = vector.load %arg0[%c1_84, %c1_85, %c1_86] : memref<2x2x8xf32, #tpu.memory_space<vmem>>, vector<1x1x6xf32>
    %66 = vector.shape_cast %65 : vector<1x1x6xf32> to vector<1x6xf32>
    %c0_87 = arith.constant 0 : index
    %c1_88 = arith.constant 1 : index
    %c1_89 = arith.constant 1 : index
    %67 = vector.load %arg1[%c0_87, %c1_88, %c1_89] : memref<2x2x8xf32, #tpu.memory_space<vmem>>, vector<1x1x6xf32>
    %68 = vector.shape_cast %67 : vector<1x1x6xf32> to vector<1x6xf32>
    %c1_90 = arith.constant 1 : index
    %c1_91 = arith.constant 1 : index
    %c1_92 = arith.constant 1 : index
    %69 = vector.load %arg1[%c1_90, %c1_91, %c1_92] : memref<2x2x8xf32, #tpu.memory_space<vmem>>, vector<1x1x6xf32>
    %70 = vector.shape_cast %69 : vector<1x1x6xf32> to vector<1x6xf32>
    %71 = tpu.concatenate %64, %66, %68, %70 in 1 : vector<1x6xf32>, vector<1x6xf32>, vector<1x6xf32>, vector<1x6xf32> -> vector<1x24xf32>
    %c0_93 = arith.constant 0 : index
    %c1_94 = arith.constant 1 : index
    %c1_95 = arith.constant 1 : index
    %72 = vector.load %arg1[%c0_93, %c1_94, %c1_95] : memref<2x2x8xf32, #tpu.memory_space<vmem>>, vector<1x1x6xf32>
    %73 = vector.shape_cast %72 : vector<1x1x6xf32> to vector<1x6xf32>
    %c1_96 = arith.constant 1 : index
    %c1_97 = arith.constant 1 : index
    %c1_98 = arith.constant 1 : index
    %74 = vector.load %arg1[%c1_96, %c1_97, %c1_98] : memref<2x2x8xf32, #tpu.memory_space<vmem>>, vector<1x1x6xf32>
    %75 = vector.shape_cast %74 : vector<1x1x6xf32> to vector<1x6xf32>
    %c0_99 = arith.constant 0 : index
    %c1_100 = arith.constant 1 : index
    %c2_101 = arith.constant 2 : index
    %76 = vector.load %arg0[%c0_99, %c1_100, %c2_101] : memref<2x2x8xf32, #tpu.memory_space<vmem>>, vector<1x1x6xf32>
    %77 = vector.shape_cast %76 : vector<1x1x6xf32> to vector<1x6xf32>
    %c1_102 = arith.constant 1 : index
    %c1_103 = arith.constant 1 : index
    %c2_104 = arith.constant 2 : index
    %78 = vector.load %arg0[%c1_102, %c1_103, %c2_104] : memref<2x2x8xf32, #tpu.memory_space<vmem>>, vector<1x1x6xf32>
    %79 = vector.shape_cast %78 : vector<1x1x6xf32> to vector<1x6xf32>
    %80 = tpu.concatenate %73, %75, %77, %79 in 1 : vector<1x6xf32>, vector<1x6xf32>, vector<1x6xf32>, vector<1x6xf32> -> vector<1x24xf32>
    %c0_105 = arith.constant 0 : index
    %c1_106 = arith.constant 1 : index
    %c2_107 = arith.constant 2 : index
    %81 = vector.load %arg0[%c0_105, %c1_106, %c2_107] : memref<2x2x8xf32, #tpu.memory_space<vmem>>, vector<1x1x6xf32>
    %82 = vector.shape_cast %81 : vector<1x1x6xf32> to vector<1x6xf32>
    %c1_108 = arith.constant 1 : index
    %c1_109 = arith.constant 1 : index
    %c2_110 = arith.constant 2 : index
    %83 = vector.load %arg0[%c1_108, %c1_109, %c2_110] : memref<2x2x8xf32, #tpu.memory_space<vmem>>, vector<1x1x6xf32>
    %84 = vector.shape_cast %83 : vector<1x1x6xf32> to vector<1x6xf32>
    %c0_111 = arith.constant 0 : index
    %c1_112 = arith.constant 1 : index
    %c2_113 = arith.constant 2 : index
    %85 = vector.load %arg1[%c0_111, %c1_112, %c2_113] : memref<2x2x8xf32, #tpu.memory_space<vmem>>, vector<1x1x6xf32>
    %86 = vector.shape_cast %85 : vector<1x1x6xf32> to vector<1x6xf32>
    %c1_114 = arith.constant 1 : index
    %c1_115 = arith.constant 1 : index
    %c2_116 = arith.constant 2 : index
    %87 = vector.load %arg1[%c1_114, %c1_115, %c2_116] : memref<2x2x8xf32, #tpu.memory_space<vmem>>, vector<1x1x6xf32>
    %88 = vector.shape_cast %87 : vector<1x1x6xf32> to vector<1x6xf32>
    %89 = tpu.concatenate %82, %84, %86, %88 in 1 : vector<1x6xf32>, vector<1x6xf32>, vector<1x6xf32>, vector<1x6xf32> -> vector<1x24xf32>
    %90 = tpu.concatenate %8, %17, %26, %35, %44, %53, %62, %71, %80, %89 in 0 : vector<1x24xf32>, vector<1x24xf32>, vector<1x24xf32>, vector<1x24xf32>, vector<1x24xf32>, vector<1x24xf32>, vector<1x24xf32>, vector<1x24xf32>, vector<1x24xf32>, vector<1x24xf32> -> vector<10x24xf32>
    %c0_117 = arith.constant 0 : index
    %c0_118 = arith.constant 0 : index
    %91 = vector.load %arg2[%c0_117, %c0_118] : memref<2x10xf32, #tpu.memory_space<vmem>>, vector<2x10xf32>
    %cst = arith.constant dense<0.000000e+00> : vector<2x24xf32>
    %92 = tpu.matmul %91, %90, %cst {dimension_numbers = #tpu.dot_dimension_numbers<[1], [0], [0], [1], [0, 0, 1, 1], [], []>} : vector<2x10xf32>, vector<10x24xf32>, vector<2x24xf32> -> vector<2x24xf32>
    %93 = vector.extract_strided_slice %92 {offsets = [0, 0], sizes = [2, 12], strides = [1, 1]} : vector<2x24xf32> to vector<2x12xf32>
    %94 = vector.extract_strided_slice %92 {offsets = [0, 12], sizes = [2, 12], strides = [1, 1]} : vector<2x24xf32> to vector<2x12xf32>
    %95 = arith.maximumf %93, %94 : vector<2x12xf32>
    %c0_119 = arith.constant 0 : index
    %c0_120 = arith.constant 0 : index
    %96 = vector.load %arg3[%c0_119, %c0_120] : memref<2x1xf32, #tpu.memory_space<vmem>>, vector<2x1xf32>
    %97 = vector.broadcast %96 : vector<2x1xf32> to vector<2x12xf32>
    %98 = arith.addf %95, %97 : vector<2x12xf32>
    %cst_121 = arith.constant 0.000000e+00 : f32
    %99 = vector.broadcast %cst_121 : f32 to vector<2x12xf32>
    %100 = arith.maximumf %98, %99 : vector<2x12xf32>
    %101 = vector.extract_strided_slice %100 {offsets = [0, 0], sizes = [2, 6], strides = [1, 1]} : vector<2x12xf32> to vector<2x6xf32>
    %c0_122 = arith.constant 0 : index
    %c0_123 = arith.constant 0 : index
    %c0_124 = arith.constant 0 : index
    %102 = vector.load %arg4[%c0_122, %c0_123, %c0_124] : memref<2x2x6xf32, #tpu.memory_space<vmem>>, vector<1x2x6xf32>
    %103 = vector.shape_cast %102 : vector<1x2x6xf32> to vector<2x6xf32>
    %104 = vector.shape_cast %101 : vector<2x6xf32> to vector<1x2x6xf32>
    tpu.vector_store %arg4[%c0_122, %c0_123, %c0_124], %104 {strides = array<i32>} : memref<2x2x6xf32, #tpu.memory_space<vmem>>, vector<1x2x6xf32>,
    %105 = vector.extract_strided_slice %100 {offsets = [0, 6], sizes = [2, 6], strides = [1, 1]} : vector<2x12xf32> to vector<2x6xf32>
    %c1_125 = arith.constant 1 : index
    %c0_126 = arith.constant 0 : index
    %c0_127 = arith.constant 0 : index
    %106 = vector.load %arg4[%c1_125, %c0_126, %c0_127] : memref<2x2x6xf32, #tpu.memory_space<vmem>>, vector<1x2x6xf32>
    %107 = vector.shape_cast %106 : vector<1x2x6xf32> to vector<2x6xf32>
    %108 = vector.shape_cast %105 : vector<2x6xf32> to vector<1x2x6xf32>
    tpu.vector_store %arg4[%c1_125, %c0_126, %c0_127], %108 {strides = array<i32>} : memref<2x2x6xf32, #tpu.memory_space<vmem>>, vector<1x2x6xf32>,
    return
  }
}

</mosaic_0001>

<llo_original>
// kernel: tpu_custom_call.1
$region0: #{tpu_custom_call.1}
  #allocation0 [shape = 'u32[]', space=smem, size = 0x4, offset = 0x4, fixed_abs, tag = 'smem constant byte address 0x4 - core index']
  #allocation1 [shape = 'u32[144,128]{1,0:T(1,128)}', space=vmem, size = 0x12000, scoped, tag = 'internal scratch']
  %s0 = inlined_call_operand.hbm [shape: f32[2,2,8], index: 0, kind: input, shape index: {}]
  %s1 = inlined_call_operand.vmem [shape: f32[2,2,8], index: 1, kind: input, shape index: {}]
  %s2 = inlined_call_operand.vmem [shape: f32[2,10], index: 2, kind: input, shape index: {}]
  %s3 = inlined_call_operand.vmem [shape: f32[2,1], index: 3, kind: input, shape index: {}]
  %s4 = inlined_call_operand.hbm [shape: f32[2,2,6], index: 4, kind: output, shape index: {}]
  %s5 = sld [smem:[#allocation0]]
  $region30: #{tpu_custom_call.1} parent=0
    _
  %s7 = ssub.s32 1, %s5
  %s8 = scalar_select 0, %s7, %s5
  $region1: #{tpu_custom_call.1} parent=0
    #allocation2 [shape = 'u8[2048]{0}', space=vmem, size = 0x800, scoped, tag = 'input window, operand 0, single buffered']
    #allocation3 [shape = 's32[1]{0}', space=sflag, size = 0x4, scoped, tag = 'scoped memory for tpu_custom_call.1']
    #allocation4 [shape = 's32[1]{0}', space=sflag, size = 0x4, scoped, tag = 'scoped memory for tpu_custom_call.1']
    #allocation5 [shape = 'u8[2048]{0}', space=vmem, size = 0x800, scoped, tag = 'output window, operand 0, single buffered']
    %9 = vsyncpa [#allocation3], 0
    %10 = vsyncpa [#allocation4], 0
    // Predicated region
    $region2: #{tpu_custom_call.1} parent=1 // pred_check
      _
    $region3: #{tpu_custom_call.1} parent=1 // pred_check_branch
      %12 = sbr.rel (0) target = $region5
    $region4: #{tpu_custom_call.1} parent=1 // pred_region
      %s14 = ssub.s32 64, 64
      %15 = vsyncadd [#allocation3], %s14
      %s16 = sshll.u32 [#allocation2], 4
      %s17 = int_to_ptr.vmem [resolvable:$true] %s16
      %22 = dma.hbm_to_vmem [thread:$0]  %s0, 64, %s17, [#allocation3], 32, 32, 2
    $region5: #{tpu_custom_call.1} parent=1 // pred_fallthru
      _
    // Predicated region
    $region6: #{tpu_custom_call.1} parent=1 // pred_check
      _
    $region7: #{tpu_custom_call.1} parent=1 // pred_check_branch
      %24 = sbr.rel (0) target = $region9
    $region8: #{tpu_custom_call.1} parent=1 // pred_region
      _
    $region9: #{tpu_custom_call.1} parent=1 // pred_fallthru
      _
    // Predicated region
    $region10: #{tpu_custom_call.1} parent=1 // pred_check
      _
    $region11: #{tpu_custom_call.1} parent=1 // pred_check_branch
      %26 = sbr.rel (0) target = $region13
    $region12: #{tpu_custom_call.1} parent=1 // pred_region
      _
    $region13: #{tpu_custom_call.1} parent=1 // pred_fallthru
      _
    // Predicated region
    $region14: #{tpu_custom_call.1} parent=1 // pred_check
      _
    $region15: #{tpu_custom_call.1} parent=1 // pred_check_branch
      %28 = sbr.rel (0) target = $region17
    $region16: #{tpu_custom_call.1} parent=1 // pred_region
      _
    $region17: #{tpu_custom_call.1} parent=1 // pred_fallthru
      _
    // Predicated region
    $region18: #{tpu_custom_call.1} parent=1 // pred_check
      _
    $region19: #{tpu_custom_call.1} parent=1 // pred_check_branch
      %30 = sbr.rel (0) target = $region21
    $region20: #{tpu_custom_call.1} parent=1 // pred_region
      %31 = dma.done [#allocation3], 64
    $region21: #{tpu_custom_call.1} parent=1 // pred_fallthru
      _
    %v32 = vld [vmem:[#allocation2] sm:$0x1]
    %s33 = scalar_lea.vmem [#allocation2], 2
    %v34 = vld [vmem:[%s33] sm:$0x1]
    %v35 = vld [vmem:[%s1] sm:$0x1]
    %s36 = scalar_lea.vmem %s1, 2
    %v37 = vld [vmem:[%s36] sm:$0x1]
    %39 = vrot.lane.b32.xlu0 %v34, 6
    %v40 = vpop.permute.xlu0 %39
    %43 = vrot.lane.b32.xlu0 %v35, 12
    %v44 = vpop.permute.xlu0 %43
    %47 = vrot.lane.b32.xlu0 %v37, 18
    %v48 = vpop.permute.xlu0 %47
    %vm50 = vcmask 48128
    %v51 = vsel %vm50, %v32, %v40
    %vm52 = vcmask 97280
    %v53 = vsel %vm52, %v51, %v44
    %vm54 = vcmask 146432
    %v55 = vsel %vm54, %v53, %v48
    %56 = vrot.lane.b32.xlu0 %v37, 6
    %v57 = vpop.permute.xlu0 %56
    %60 = vrot.lane.b32.xlu0 %v32, 11
    %v61 = vpop.permute.xlu0 %60
    %63 = vrot.lane.b32.xlu0 %v34, 17
    %v64 = vpop.permute.xlu0 %63
    %v66 = vsel %vm50, %v35, %v57
    %v67 = vsel %vm52, %v66, %v61
    %v68 = vsel %vm54, %v67, %v64
    %69 = vrot.lane.b32.xlu0 %v32, 127
    %v70 = vpop.permute.xlu0 %69
    %72 = vrot.lane.b32.xlu0 %v34, 5
    %v73 = vpop.permute.xlu0 %72
    %75 = vrot.lane.b32.xlu0 %v35, 11
    %v76 = vpop.permute.xlu0 %75
    %78 = vrot.lane.b32.xlu0 %v37, 17
    %v79 = vpop.permute.xlu0 %78
    %v81 = vsel %vm50, %v70, %v73
    %v82 = vsel %vm52, %v81, %v76
    %v83 = vsel %vm54, %v82, %v79
    %84 = vrot.lane.b32.xlu0 %v35, 127
    %v85 = vpop.permute.xlu0 %84
    %87 = vrot.lane.b32.xlu0 %v37, 5
    %v88 = vpop.permute.xlu0 %87
    %90 = vrot.lane.b32.xlu0 %v32, 10
    %v91 = vpop.permute.xlu0 %90
    %93 = vrot.lane.b32.xlu0 %v34, 16
    %v94 = vpop.permute.xlu0 %93
    %v96 = vsel %vm50, %v85, %v88
    %v97 = vsel %vm52, %v96, %v91
    %v98 = vsel %vm54, %v97, %v94
    %99 = vrot.lane.b32.xlu0 %v32, 126
    %v100 = vpop.permute.xlu0 %99
    %102 = vrot.lane.b32.xlu0 %v34, 4
    %v103 = vpop.permute.xlu0 %102
    %105 = vrot.lane.b32.xlu0 %v35, 10
    %v106 = vpop.permute.xlu0 %105
    %108 = vrot.lane.b32.xlu0 %v37, 16
    %v109 = vpop.permute.xlu0 %108
    %v111 = vsel %vm50, %v100, %v103
    %v112 = vsel %vm52, %v111, %v106
    %v113 = vsel %vm54, %v112, %v109
    %v114 = vld [vmem:[#allocation2 + $0x1] sm:$0x1]
    %v115 = vld [vmem:[%s33 + $0x1] sm:$0x1]
    %v116 = vld [vmem:[%s1 + $0x1] sm:$0x1]
    %v117 = vld [vmem:[%s36 + $0x1] sm:$0x1]
    %119 = vrot.lane.b32.xlu0 %v115, 6
    %v120 = vpop.permute.xlu0 %119
    %123 = vrot.lane.b32.xlu0 %v116, 12
    %v124 = vpop.permute.xlu0 %123
    %127 = vrot.lane.b32.xlu0 %v117, 18
    %v128 = vpop.permute.xlu0 %127
    %v130 = vsel %vm50, %v114, %v120
    %v131 = vsel %vm52, %v130, %v124
    %v132 = vsel %vm54, %v131, %v128
    %133 = vrot.lane.b32.xlu0 %v117, 6
    %v134 = vpop.permute.xlu0 %133
    %137 = vrot.lane.b32.xlu0 %v114, 11
    %v138 = vpop.permute.xlu0 %137
    %140 = vrot.lane.b32.xlu0 %v115, 17
    %v141 = vpop.permute.xlu0 %140
    %v143 = vsel %vm50, %v116, %v134
    %v144 = vsel %vm52, %v143, %v138
    %v145 = vsel %vm54, %v144, %v141
    %146 = vrot.lane.b32.xlu0 %v114, 127
    %v147 = vpop.permute.xlu0 %146
    %149 = vrot.lane.b32.xlu0 %v115, 5
    %v150 = vpop.permute.xlu0 %149
    %152 = vrot.lane.b32.xlu0 %v116, 11
    %v153 = vpop.permute.xlu0 %152
    %155 = vrot.lane.b32.xlu0 %v117, 17
    %v156 = vpop.permute.xlu0 %155
    %v158 = vsel %vm50, %v147, %v150
    %v159 = vsel %vm52, %v158, %v153
    %v160 = vsel %vm54, %v159, %v156
    %161 = vrot.lane.b32.xlu0 %v116, 127
    %v162 = vpop.permute.xlu0 %161
    %164 = vrot.lane.b32.xlu0 %v117, 5
    %v165 = vpop.permute.xlu0 %164
    %167 = vrot.lane.b32.xlu0 %v114, 10
    %v168 = vpop.permute.xlu0 %167
    %170 = vrot.lane.b32.xlu0 %v115, 16
    %v171 = vpop.permute.xlu0 %170
    %v173 = vsel %vm50, %v162, %v165
    %v174 = vsel %vm52, %v173, %v168
    %v175 = vsel %vm54, %v174, %v171
    %176 = vrot.lane.b32.xlu0 %v114, 126
    %v177 = vpop.permute.xlu0 %176
    %179 = vrot.lane.b32.xlu0 %v115, 4
    %v180 = vpop.permute.xlu0 %179
    %182 = vrot.lane.b32.xlu0 %v116, 10
    %v183 = vpop.permute.xlu0 %182
    %185 = vrot.lane.b32.xlu0 %v117, 16
    %v186 = vpop.permute.xlu0 %185
    %v188 = vsel %vm50, %v177, %v180
    %v189 = vsel %vm52, %v188, %v183
    %v190 = vsel %vm54, %v189, %v186
    %v192 = vrot.slane %v68, 7
    %v195 = vrot.slane %v83, 6
    %v198 = vrot.slane %v98, 5
    %v201 = vrot.slane %v113, 4
    %v204 = vrot.slane %v132, 3
    %v207 = vrot.slane %v145, 2
    %v210 = vrot.slane %v160, 1
    %v213 = vrot.slane %v190, 7
    %vm215 = vcmask 1040384
    %v216 = vsel %vm215, %v55, %v192
    %vm217 = vcmask 1041408
    %v218 = vsel %vm217, %v216, %v195
    %vm219 = vcmask 1042432
    %v220 = vsel %vm219, %v218, %v198
    %vm221 = vcmask 1043456
    %v222 = vsel %vm221, %v220, %v201
    %vm223 = vcmask 1044480
    %v224 = vsel %vm223, %v222, %v204
    %vm225 = vcmask 1045504
    %v226 = vsel %vm225, %v224, %v207
    %vm227 = vcmask 1046528
    %v228 = vsel %vm227, %v226, %v210
    %v229 = vsel %vm215, %v175, %v213
    %v230 = vld [vmem:[%s2] sm:$0x3]
    %vm231 = vcmask 80896
    %v233 = vsel %vm231, %v230, 0
    %v236 = vsel %vm217, %v229, 0
    %238 = vmatprep.subr.mxu0 0.0
    %239 = vmatpush1.msra.mxu0 %v228
    %240 = vmatprep.subr.mxu0 0.0
    %241 = vmatpush1.msra.mxu0 %v236
    %242 = vmatprep.subr.mxu0 0.0
    %243 = vmatpush1.msra.mxu0 0.0
    %244 = vmatprep.subr.mxu0 0.0
    %245 = vmatpush1.msra.mxu0 0.0
    %246 = vmatprep.subr.mxu0 0.0
    %247 = vmatpush1.msra.mxu0 0.0
    %248 = vmatprep.subr.mxu0 0.0
    %249 = vmatpush1.msra.mxu0 0.0
    %250 = vmatprep.subr.mxu0 0.0
    %251 = vmatpush1.msra.mxu0 0.0
    %252 = vmatprep.subr.mxu0 0.0
    %253 = vmatpush1.msra.mxu0 0.0
    %254 = vmatprep.subr.mxu0 0.0
    %255 = vmatpush1.msra.mxu0 0.0
    %256 = vmatprep.subr.mxu0 0.0
    %257 = vmatpush1.msra.mxu0 0.0
    %258 = vmatprep.subr.mxu0 0.0
    %259 = vmatpush1.msra.mxu0 0.0
    %260 = vmatprep.subr.mxu0 0.0
    %261 = vmatpush1.msra.mxu0 0.0
    %262 = vmatprep.subr.mxu0 0.0
    %263 = vmatpush1.msra.mxu0 0.0
    %264 = vmatprep.subr.mxu0 0.0
    %265 = vmatpush1.msra.mxu0 0.0
    %266 = vmatprep.subr.mxu0 0.0
    %267 = vmatpush1.msra.mxu0 0.0
    %268 = vmatprep.subr.mxu0 0.0
    %269 = vmatpush1.msra.mxu0 0.0
    %270 = vmatprep.subr.mxu0 0.0
    %271 = vmatpush1.msra.mxu0 0.0
    %272 = vmatprep.subr.mxu0 0.0
    %273 = vmatpush1.msra.mxu0 0.0
    %274 = vmatprep.subr.mxu0 0.0
    %275 = vmatpush1.msra.mxu0 0.0
    %276 = vmatprep.subr.mxu0 0.0
    %277 = vmatpush1.msra.mxu0 0.0
    %278 = vmatprep.subr.mxu0 0.0
    %279 = vmatpush1.msra.mxu0 0.0
    %280 = vmatprep.subr.mxu0 0.0
    %281 = vmatpush1.msra.mxu0 0.0
    %282 = vmatprep.subr.mxu0 0.0
    %283 = vmatpush1.msra.mxu0 0.0
    %284 = vmatprep.subr.mxu0 0.0
    %285 = vmatpush1.msra.mxu0 0.0
    %286 = vmatprep.subr.mxu0 0.0
    %287 = vmatpush1.msra.mxu0 0.0
    %288 = vmatprep.subr.mxu0 0.0
    %289 = vmatpush1.msra.mxu0 0.0
    %290 = vmatprep.subr.mxu0 0.0
    %291 = vmatpush1.msra.mxu0 0.0
    %292 = vmatprep.subr.mxu0 0.0
    %293 = vmatpush1.msra.mxu0 0.0
    %294 = vmatprep.subr.mxu0 0.0
    %295 = vmatpush1.msra.mxu0 0.0
    %296 = vmatprep.subr.mxu0 0.0
    %297 = vmatpush1.msra.mxu0 0.0
    %298 = vmatprep.subr.mxu0 0.0
    %299 = vmatpush1.msra.mxu0 0.0
    %300 = vmatprep.subr.mxu0 0.0
    %301 = vmatpush1.msra.mxu0 0.0
    %302 = vmatprep.mubr.f32.mxu0 0.0
    %303 = vmatmul.mubr.f32.gmra.mrb[0].mxu0 %v233
    %v304 = vpop.f32.mrb[0].mxu0
    %v305 = vadd.f32 0.0, %v304
    %v306 = vpop.f32.mrb[0].mxu0
    %307 = vdwg.mxu0
    %309 = vrot.lane.b32.xlu0 %v305, 116
    %v310 = vpop.permute.xlu0 %309
    %v312 = vmax.f32 %v305, %v310
    %v313 = vld [vmem:[%s3] sm:$0x3]
    %315 = vset.pattern.permute.xlu0 0
    %316 = vperm.xlu0 %315, %v313
    %v317 = vpop.permute.xlu0 %316
    %v319 = vadd.f32 %v312, %v317
    %v320 = vmax.f32 %v319, 0.0
    %vm321 = vcmask 41984
    %322 = vst.msk [vmem:[#allocation5] sm:$0x3] %vm321, %v320
    %324 = vrot.lane.b32.xlu0 %v320, 122
    %v325 = vpop.permute.xlu0 %324
    %s327 = scalar_lea.vmem [#allocation5], 2
    %328 = vst.msk [vmem:[%s327] sm:$0x3] %vm321, %v325
    // Predicated region
    $region22: #{tpu_custom_call.1} parent=1 // pred_check
      _
    $region23: #{tpu_custom_call.1} parent=1 // pred_check_branch
      %330 = sbr.rel (0) target = $region25
    $region24: #{tpu_custom_call.1} parent=1 // pred_region
      %s332 = ssub.s32 64, 64
      %333 = vsyncadd [#allocation4], %s332
      %s334 = sshll.u32 [#allocation5], 4
      %s335 = int_to_ptr.vmem [resolvable:$true] %s334
      %340 = dma.vmem_to_hbm [thread:$0]  %s335, 64, %s4, [#allocation4], 32, 32, 2
    $region25: #{tpu_custom_call.1} parent=1 // pred_fallthru
      _
    // Predicated region
    $region26: #{tpu_custom_call.1} parent=1 // pred_check
      _
    $region27: #{tpu_custom_call.1} parent=1 // pred_check_branch
      %342 = sbr.rel (0) target = $region29
    $region28: #{tpu_custom_call.1} parent=1 // pred_region
      %343 = dma.done [#allocation4], 64
    $region29: #{tpu_custom_call.1} parent=1 // pred_fallthru
      _
    %344 = vsyncpa [#allocation3], 1
    %345 = vsyncpa [#allocation4], 1

</llo_original>
